<compile_context>
chip_gen: v7x
topology: tpu7x:2x2x1
jax: 0.10.0
libtpu: 0.0.40
codegen_flags: <defaults>
</compile_context>

<pallas_src>
import functools

import jax
import jax.numpy as jnp
from jax.experimental import pallas as pl
from jax.experimental.pallas import tpu as pltpu


def _round_up(x, m):
    return (x + m - 1) // m * m


def _sublane_pack(dtype):
    """Rows per packed sublane group for a dtype (8 f32, 16 bf16, 32 int8)."""
    itemsize = jnp.dtype(dtype).itemsize
    return max(8, 32 // max(itemsize, 1))


def _physical_vmem_bytes():
    try:
        info = pltpu.get_tpu_info()
        cap = getattr(info, "vmem_capacity_bytes", None)
        if cap:
            return int(cap)
    except Exception:
        pass
    return 64 * 2**20  # conservative fallback (v7x per-core VMEM)


def _estimate_vmem(tm, tn, dim, x_bytes, w_bytes, o_bytes, use_acc):
    """Per-step VMEM working set: double-buffered operands + in-kernel temps."""
    b = 0
    b += 2 * tm * dim * x_bytes            # x tile
    b += 2 * 2 * dim * tn * w_bytes        # w1 + w3 tiles
    b += 2 * 2 * tn * w_bytes              # b1 + b3 tiles
    b += 2 * tn * dim * w_bytes            # w2 tile
    b += 2 * dim * w_bytes                 # b2 (resident)
    b += 2 * tm * dim * o_bytes            # output tile
    if use_acc:
        b += tm * dim * 4                  # f32 accumulator scratch
    b += tm * tn * (3 * 4 + w_bytes)       # h1, h3, gated (f32) + gated cast
    return b


def _pick_tiles(M, dim, inter, x_bytes, w_bytes, o_bytes, use_acc, budget, sub,
                tm_max=1024):
    """Pick (tm, tn). Priority: largest token tile (weight HBM traffic ~ 1/tm),
    then largest inter tile; keep tn >= 256 (MXU-efficient contraction on
    v6e/v7x) before ever dropping to 128."""
    tm_cap = max(sub, min(tm_max, _round_up(M, sub)))
    tm_cands = []
    t = tm_cap
    while True:
        tm_cands.append(t)
        if t <= sub:
            break
        nxt = max(sub, _round_up(t // 2, sub))
        if nxt >= t:
            break
        t = nxt

    tn_all = sorted({c for c in (inter, 4096, 2048, 1024, 512, 256, 128)
                     if c <= inter and inter % c == 0}, reverse=True)
    tn_pref = [c for c in tn_all if c >= 256 or c == inter] or tn_all

    for tn_cands in (tn_pref, tn_all):
        for tm in tm_cands:
            for tn in tn_cands:
                if _estimate_vmem(tm, tn, dim, x_bytes, w_bytes, o_bytes,
                                  use_acc) <= budget:
                    return tm, tn
    raise ValueError(
        f"No (tm, tn) tiling for M={M}, dim={dim}, inter={inter} fits the "
        f"{budget}-byte VMEM budget (inter must be divisible by a 128-multiple).")


def _mlp_kernel(x_ref, w1_ref, b1_ref, w3_ref, b3_ref, w2_ref, b2_ref, o_ref,
                *scratch, mxu_dtype):
    """One (token-tile i, inter-tile j) step of the SwiGLU MLP.

    x_ref : (tm, dim)      w1_ref/w3_ref : (dim, tn)    b1_ref/b3_ref : (1, tn)
    w2_ref: (tn, dim)      b2_ref : (1, dim)            o_ref : (tm, dim)
    scratch (optional): (tm, dim) f32 accumulator; for f32 output the resident
    output block itself is the accumulator.
    """
    acc_ref = scratch[0] if scratch else o_ref
    j = pl.program_id(1)

    @pl.when(j == 0)
    def _():
        acc_ref[...] = jnp.zeros_like(acc_ref)

    x = x_ref[...]
    if mxu_dtype is not None:
        x = x.astype(mxu_dtype)

    # Up-projection: two MXU matmuls share the same resident x tile.
    h1 = jnp.dot(x, w1_ref[...], preferred_element_type=jnp.float32)
    h1 = h1 + b1_ref[...].astype(jnp.float32)
    h3 = jnp.dot(x, w3_ref[...], preferred_element_type=jnp.float32)
    h3 = h3 + b3_ref[...].astype(jnp.float32)

    gated = (h1 * jax.nn.sigmoid(h1)) * h3        # SiLU(h1) * h3, f32 VPU/EUP

    # Partial down-projection, accumulated in f32 across inter tiles.
    acc_ref[...] += jnp.dot(gated.astype(w2_ref.dtype), w2_ref[...],
                            preferred_element_type=jnp.float32)

    @pl.when(j == pl.num_programs(1) - 1)
    def _():
        o_ref[...] = (acc_ref[...] + b2_ref[...].astype(jnp.float32)
                      ).astype(o_ref.dtype)


def mlp_pallas(x, w1, b1, w3, b3, w2, b2, *, tm=None, tn=None,
               out_dtype=None, mxu_dtype=None):
    """SwiGLU MLP: y = (silu(x @ w1 + b1) * (x @ w3 + b3)) @ w2 + b2.

    x: [..., dim]; weights in [in, out] layout; biases 1-D.
    mxu_dtype (e.g. jnp.bfloat16): opt-in accuracy/speed tradeoff — weights and
    MXU operands are cast, accumulation and SiLU stay f32.
    """
    orig_shape = x.shape
    dim = orig_shape[-1]
    inter = w1.shape[1]
    out_dtype = jnp.dtype(out_dtype or x.dtype)

    if mxu_dtype is not None:
        mxu_dtype = jnp.dtype(mxu_dtype)
        w1 = w1.astype(mxu_dtype)
        w3 = w3.astype(mxu_dtype)
        w2 = w2.astype(mxu_dtype)

    x2 = x.reshape(-1, dim)
    M = x2.shape[0]

    x_bytes = jnp.dtype(x.dtype).itemsize
    w_bytes = jnp.dtype(w1.dtype).itemsize
    o_bytes = out_dtype.itemsize
    use_acc = out_dtype != jnp.dtype(jnp.float32)
    sub = _sublane_pack(x.dtype)

    phys_vmem = _physical_vmem_bytes()
    budget = int(phys_vmem * 0.75)   # ~96 MiB on v5e/v6e, ~48 MiB on v7x

    if tm is None or tn is None:
        auto_tm, auto_tn = _pick_tiles(M, dim, inter, x_bytes, w_bytes, o_bytes,
                                       use_acc, budget, sub)
        tm = tm if tm is not None else auto_tm
        tn = tn if tn is not None else auto_tn
    tm = max(sub, _round_up(min(tm, _round_up(M, sub)), sub))
    if inter % tn != 0:
        raise ValueError(f"inter_dim={inter} must be divisible by tn={tn}")
    n_j = inter // tn

    M_pad = _round_up(M, tm)
    if M_pad != M:
        x2 = jnp.pad(x2, ((0, M_pad - M), (0, 0)))

    b1 = jnp.asarray(b1).reshape(1, inter)
    b3 = jnp.asarray(b3).reshape(1, inter)
    b2 = jnp.asarray(b2).reshape(1, dim)

    est = _estimate_vmem(tm, tn, dim, x_bytes, w_bytes, o_bytes, use_acc)
    vmem_limit = int(min(max(int(est * 1.15), 32 * 2**20), int(phys_vmem * 0.9)))

    grid = (M_pad // tm, n_j)
    # TODO(synk): v7x decode (grid[0] == 1) leaves the second TensorCore idle;
    # split the inter reduction across cores with a partial-sum epilogue.

    flops = 6 * M_pad * dim * inter                        # 3 matmuls, 2 flops/MAC
    bias_bytes = jnp.dtype(b1.dtype).itemsize
    bytes_accessed = int(
        M_pad * dim * (x_bytes + o_bytes)
        + grid[0] * (w1.size + w3.size + w2.size) * w_bytes
        + grid[0] * (b1.size + b3.size + b2.size) * bias_bytes)

    scratch_shapes = [pltpu.VMEM((tm, dim), jnp.float32)] if use_acc else []

    out = pl.pallas_call(
        functools.partial(_mlp_kernel, mxu_dtype=mxu_dtype),
        out_shape=jax.ShapeDtypeStruct((M_pad, dim), out_dtype),
        grid_spec=pltpu.PrefetchScalarGridSpec(
            num_scalar_prefetch=0,
            grid=grid,
            in_specs=[
                pl.BlockSpec((tm, dim), lambda i, j: (i, 0)),   # x tile
                pl.BlockSpec((dim, tn), lambda i, j: (0, j)),   # w1 tile
                pl.BlockSpec((1, tn), lambda i, j: (0, j)),     # b1 tile
                pl.BlockSpec((dim, tn), lambda i, j: (0, j)),   # w3 tile
                pl.BlockSpec((1, tn), lambda i, j: (0, j)),     # b3 tile
                pl.BlockSpec((tn, dim), lambda i, j: (j, 0)),   # w2 tile
                pl.BlockSpec((1, dim), lambda i, j: (0, 0)),    # b2 (resident)
            ],
            out_specs=pl.BlockSpec((tm, dim), lambda i, j: (i, 0)),
            scratch_shapes=scratch_shapes,
        ),
        compiler_params=pltpu.CompilerParams(
            dimension_semantics=("parallel", "arbitrary"),
            vmem_limit_bytes=vmem_limit,
        ),
        cost_estimate=pl.CostEstimate(
            flops=flops,
            transcendentals=M_pad * inter,
            bytes_accessed=bytes_accessed,
        ),
    )(x2, w1, b1, w3, b3, w2, b2)

    if M_pad != M:
        out = out[:M]
    return out.reshape(orig_shape[:-1] + (dim,))


def mlp_reference(x, w1, b1, w3, b3, w2, b2):
    h1 = x @ w1 + b1.reshape(1, -1)
    h3 = x @ w3 + b3.reshape(1, -1)
    return (h1 * jax.nn.sigmoid(h1) * h3) @ w2 + b2.reshape(1, -1)


if __name__ == "__main__":
    # Small shapes consistent with the module: batch=2, seq=8, dim=32, inter_dim=64
    batch, seq, dim, inter_dim = 2, 8, 32, 64

    key = jax.random.PRNGKey(0)
    kx, k1, kb1, k3, kb3, k2, kb2, kr = jax.random.split(key, 8)

    x = jax.random.normal(kx, (batch, seq, dim), dtype=jnp.float32)

    # torch.nn.Linear weights stored as [in_dim, out_dim] (transposed vs torch).
    w1 = jax.random.normal(k1, (dim, inter_dim), dtype=jnp.float32) * 0.05
    b1 = jax.random.normal(kb1, (inter_dim,), dtype=jnp.float32) * 0.05
    w3 = jax.random.normal(k3, (dim, inter_dim), dtype=jnp.float32) * 0.05
    b3 = jax.random.normal(kb3, (inter_dim,), dtype=jnp.float32) * 0.05
    w2 = jax.random.normal(k2, (inter_dim, dim), dtype=jnp.float32) * 0.05
    b2 = jax.random.normal(kb2, (dim,), dtype=jnp.float32) * 0.05

    # Main check: (batch, seq, dim) input, f32 (no-scratch accumulate-in-output path).
    y = mlp_pallas(x, w1, b1, w3, b3, w2, b2)
    jax.block_until_ready(y)
    y_ref = mlp_reference(x.reshape(-1, dim), w1, b1, w3, b3, w2, b2
                          ).reshape(batch, seq, dim)
    assert jnp.allclose(y, y_ref, atol=1e-4, rtol=1e-4), "mismatch vs reference"

    # Ragged token count exercises the padding path.
    x_ragged = jax.random.normal(kr, (19, dim), dtype=jnp.float32)
    y_ragged = mlp_pallas(x_ragged, w1, b1, w3, b3, w2, b2)
    jax.block_until_ready(y_ragged)
    y_ragged_ref = mlp_reference(x_ragged, w1, b1, w3, b3, w2, b2)
    assert jnp.allclose(y_ragged, y_ragged_ref, atol=1e-4, rtol=1e-4), "ragged mismatch"

    # bf16 inputs/weights: exercises the f32-scratch accumulator path.
    bf = jnp.bfloat16
    y_bf = mlp_pallas(x.astype(bf), w1.astype(bf), b1.astype(bf),
                      w3.astype(bf), b3.astype(bf), w2.astype(bf), b2.astype(bf))
    jax.block_until_ready(y_bf)
    y_bf_ref = mlp_reference(
        x.astype(bf).astype(jnp.float32).reshape(-1, dim),
        w1.astype(bf).astype(jnp.float32), b1.astype(bf).astype(jnp.float32),
        w3.astype(bf).astype(jnp.float32), b3.astype(bf).astype(jnp.float32),
        w2.astype(bf).astype(jnp.float32), b2.astype(bf).astype(jnp.float32),
    ).reshape(batch, seq, dim)
    assert jnp.allclose(y_bf.astype(jnp.float32), y_bf_ref, atol=2e-2, rtol=5e-2), \
        "bf16 mismatch"

    # Opt-in bf16-MXU path on f32 data (in-kernel cast branch).
    y_mxu = mlp_pallas(x, w1, b1, w3, b3, w2, b2, mxu_dtype=jnp.bfloat16)
    jax.block_until_ready(y_mxu)
    assert jnp.allclose(y_mxu, y_ref, atol=2e-2, rtol=5e-2), "mxu_dtype mismatch"

    print("KERNEL_OK")
</pallas_src>

<mosaic_0001>
module attributes {stable_mosaic.version = 11 : i64} {
  func.func @_mlp_kernel(%arg0: i32, %arg1: i32, %arg2: memref<16x32xf32, #tpu.memory_space<vmem>>, %arg3: memref<32x64xf32, #tpu.memory_space<vmem>>, %arg4: memref<1x64xf32, #tpu.memory_space<vmem>>, %arg5: memref<32x64xf32, #tpu.memory_space<vmem>>, %arg6: memref<1x64xf32, #tpu.memory_space<vmem>>, %arg7: memref<64x32xf32, #tpu.memory_space<vmem>>, %arg8: memref<1x32xf32, #tpu.memory_space<vmem>>, %arg9: memref<16x32xf32, #tpu.memory_space<vmem>>) attributes {dimension_semantics = [#tpu.dimension_semantics<parallel>, #tpu.dimension_semantics<arbitrary>], iteration_bounds = array<i64: 1, 1>, scalar_prefetch = 0 : i64, scratch_operands = 0 : i64, tpu.core_type = #tpu.core_type<tc>, window_params = [{transform_indices = @transform_0, window_bounds = array<i64: 16, 32>}, {transform_indices = @transform_1, window_bounds = array<i64: 32, 64>}, {transform_indices = @transform_2, window_bounds = array<i64: 1, 64>}, {transform_indices = @transform_3, window_bounds = array<i64: 32, 64>}, {transform_indices = @transform_4, window_bounds = array<i64: 1, 64>}, {transform_indices = @transform_5, window_bounds = array<i64: 64, 32>}, {pipeline_mode = #tpu.pipeline_mode<synchronous>, transform_indices = @transform_6, window_bounds = array<i64: 1, 32>}, {transform_indices = @transform_7, window_bounds = array<i64: 16, 32>}]} {
    %c0_i32 = arith.constant 0 : i32
    %0 = arith.cmpi eq, %arg1, %c0_i32 : i32
    %1 = arith.extui %0 : i1 to i32
    %c0_i32_0 = arith.constant 0 : i32
    %2 = arith.cmpi ne, %1, %c0_i32_0 : i32
    scf.if %2 {
      %cst_21 = arith.constant 0.000000e+00 : f32
      %29 = vector.broadcast %cst_21 : f32 to vector<16x32xf32>
      %c0_22 = arith.constant 0 : index
      %c0_23 = arith.constant 0 : index
      %30 = vector.load %arg9[%c0_22, %c0_23] : memref<16x32xf32, #tpu.memory_space<vmem>>, vector<16x32xf32>
      tpu.vector_store %arg9[%c0_22, %c0_23], %29 {strides = array<i32>} : memref<16x32xf32, #tpu.memory_space<vmem>>, vector<16x32xf32>,
    } else {
    }
    %c0 = arith.constant 0 : index
    %c0_1 = arith.constant 0 : index
    %3 = vector.load %arg2[%c0, %c0_1] : memref<16x32xf32, #tpu.memory_space<vmem>>, vector<16x32xf32>
    %c0_2 = arith.constant 0 : index
    %c0_3 = arith.constant 0 : index
    %4 = vector.load %arg3[%c0_2, %c0_3] : memref<32x64xf32, #tpu.memory_space<vmem>>, vector<32x64xf32>
    %cst = arith.constant dense<0.000000e+00> : vector<16x64xf32>
    %5 = tpu.matmul %3, %4, %cst {dimension_numbers = #tpu.dot_dimension_numbers<[1], [0], [0], [1], [0, 0, 1, 1], [], []>} : vector<16x32xf32>, vector<32x64xf32>, vector<16x64xf32> -> vector<16x64xf32>
    %c0_4 = arith.constant 0 : index
    %c0_5 = arith.constant 0 : index
    %6 = vector.load %arg4[%c0_4, %c0_5] : memref<1x64xf32, #tpu.memory_space<vmem>>, vector<1x64xf32>
    %7 = vector.broadcast %6 : vector<1x64xf32> to vector<16x64xf32>
    %8 = arith.addf %5, %7 : vector<16x64xf32>
    %c0_6 = arith.constant 0 : index
    %c0_7 = arith.constant 0 : index
    %9 = vector.load %arg5[%c0_6, %c0_7] : memref<32x64xf32, #tpu.memory_space<vmem>>, vector<32x64xf32>
    %cst_8 = arith.constant dense<0.000000e+00> : vector<16x64xf32>
    %10 = tpu.matmul %3, %9, %cst_8 {dimension_numbers = #tpu.dot_dimension_numbers<[1], [0], [0], [1], [0, 0, 1, 1], [], []>} : vector<16x32xf32>, vector<32x64xf32>, vector<16x64xf32> -> vector<16x64xf32>
    %c0_9 = arith.constant 0 : index
    %c0_10 = arith.constant 0 : index
    %11 = vector.load %arg6[%c0_9, %c0_10] : memref<1x64xf32, #tpu.memory_space<vmem>>, vector<1x64xf32>
    %12 = vector.broadcast %11 : vector<1x64xf32> to vector<16x64xf32>
    %13 = arith.addf %10, %12 : vector<16x64xf32>
    %14 = arith.negf %8 : vector<16x64xf32>
    %15 = math.exp %14 : vector<16x64xf32>
    %cst_11 = arith.constant 1.000000e+00 : f32
    %16 = vector.broadcast %cst_11 : f32 to vector<16x64xf32>
    %17 = arith.addf %16, %15 : vector<16x64xf32>
    %18 = arith.divf %16, %17 : vector<16x64xf32>
    %19 = arith.mulf %8, %18 : vector<16x64xf32>
    %20 = arith.mulf %19, %13 : vector<16x64xf32>
    %c0_12 = arith.constant 0 : index
    %c0_13 = arith.constant 0 : index
    %21 = vector.load %arg9[%c0_12, %c0_13] : memref<16x32xf32, #tpu.memory_space<vmem>>, vector<16x32xf32>
    %c0_14 = arith.constant 0 : index
    %c0_15 = arith.constant 0 : index
    %22 = vector.load %arg7[%c0_14, %c0_15] : memref<64x32xf32, #tpu.memory_space<vmem>>, vector<64x32xf32>
    %cst_16 = arith.constant dense<0.000000e+00> : vector<16x32xf32>
    %23 = tpu.matmul %20, %22, %cst_16 {dimension_numbers = #tpu.dot_dimension_numbers<[1], [0], [0], [1], [0, 0, 1, 1], [], []>} : vector<16x64xf32>, vector<64x32xf32>, vector<16x32xf32> -> vector<16x32xf32>
    %24 = arith.addf %21, %23 : vector<16x32xf32>
    %c0_17 = arith.constant 0 : index
    %c0_18 = arith.constant 0 : index
    %25 = vector.load %arg9[%c0_17, %c0_18] : memref<16x32xf32, #tpu.memory_space<vmem>>, vector<16x32xf32>
    tpu.vector_store %arg9[%c0_17, %c0_18], %24 {strides = array<i32>} : memref<16x32xf32, #tpu.memory_space<vmem>>, vector<16x32xf32>,
    %c0_i32_19 = arith.constant 0 : i32
    %26 = arith.cmpi eq, %arg1, %c0_i32_19 : i32
    %27 = arith.extui %26 : i1 to i32
    %c0_i32_20 = arith.constant 0 : i32
    %28 = arith.cmpi ne, %27, %c0_i32_20 : i32
    scf.if %28 {
      %c0_21 = arith.constant 0 : index
      %c0_22 = arith.constant 0 : index
      %29 = vector.load %arg9[%c0_21, %c0_22] : memref<16x32xf32, #tpu.memory_space<vmem>>, vector<16x32xf32>
      %c0_23 = arith.constant 0 : index
      %c0_24 = arith.constant 0 : index
      %30 = vector.load %arg8[%c0_23, %c0_24] : memref<1x32xf32, #tpu.memory_space<vmem>>, vector<1x32xf32>
      %31 = vector.broadcast %30 : vector<1x32xf32> to vector<16x32xf32>
      %32 = arith.addf %29, %31 : vector<16x32xf32>
      %c0_25 = arith.constant 0 : index
      %c0_26 = arith.constant 0 : index
      %33 = vector.load %arg9[%c0_25, %c0_26] : memref<16x32xf32, #tpu.memory_space<vmem>>, vector<16x32xf32>
      tpu.vector_store %arg9[%c0_25, %c0_26], %32 {strides = array<i32>} : memref<16x32xf32, #tpu.memory_space<vmem>>, vector<16x32xf32>,
    } else {
    }
    return
  }
  func.func @transform_0(%arg0: i32, %arg1: i32) -> (i32, i32) {
    %c0_i32 = arith.constant 0 : i32
    %c0_i32_0 = arith.constant 0 : i32
    return %arg0, %c0_i32 : i32, i32
  }
  func.func @transform_1(%arg0: i32, %arg1: i32) -> (i32, i32) {
    %c0_i32 = arith.constant 0 : i32
    %c0_i32_0 = arith.constant 0 : i32
    return %c0_i32, %arg1 : i32, i32
  }
  func.func @transform_2(%arg0: i32, %arg1: i32) -> (i32, i32) {
    %c0_i32 = arith.constant 0 : i32
    %c0_i32_0 = arith.constant 0 : i32
    return %c0_i32, %arg1 : i32, i32
  }
  func.func @transform_3(%arg0: i32, %arg1: i32) -> (i32, i32) {
    %c0_i32 = arith.constant 0 : i32
    %c0_i32_0 = arith.constant 0 : i32
    return %c0_i32, %arg1 : i32, i32
  }
  func.func @transform_4(%arg0: i32, %arg1: i32) -> (i32, i32) {
    %c0_i32 = arith.constant 0 : i32
    %c0_i32_0 = arith.constant 0 : i32
    return %c0_i32, %arg1 : i32, i32
  }
  func.func @transform_5(%arg0: i32, %arg1: i32) -> (i32, i32) {
    %c0_i32 = arith.constant 0 : i32
    %c0_i32_0 = arith.constant 0 : i32
    return %arg1, %c0_i32 : i32, i32
  }
  func.func @transform_6(%arg0: i32, %arg1: i32) -> (i32, i32) {
    %c0_i32 = arith.constant 0 : i32
    %c0_i32_0 = arith.constant 0 : i32
    %c0_i32_1 = arith.constant 0 : i32
    return %c0_i32, %c0_i32_0 : i32, i32
  }
  func.func @transform_7(%arg0: i32, %arg1: i32) -> (i32, i32) {
    %c0_i32 = arith.constant 0 : i32
    %c0_i32_0 = arith.constant 0 : i32
    return %arg0, %c0_i32 : i32, i32
  }
}

</mosaic_0001>

<llo_original>
// kernel: tpu_custom_call.1
$region0: #{tpu_custom_call.1}
  #allocation0 [shape = 'u32[]', space=smem, size = 0x4, offset = 0x4, fixed_abs, tag = 'smem constant byte address 0x4 - core index']
  #allocation1 [shape = 'u32[144,128]{1,0:T(1,128)}', space=vmem, size = 0x12000, scoped, tag = 'internal scratch']
  %s0 = inlined_call_operand.vmem [shape: f32[16,32], index: 0, kind: input, shape index: {}]
  %s1 = inlined_call_operand.vmem [shape: f32[32,64], index: 1, kind: input, shape index: {}]
  %s2 = inlined_call_operand.vmem [shape: f32[1,64], index: 2, kind: input, shape index: {}]
  %s3 = inlined_call_operand.vmem [shape: f32[32,64], index: 3, kind: input, shape index: {}]
  %s4 = inlined_call_operand.vmem [shape: f32[1,64], index: 4, kind: input, shape index: {}]
  %s5 = inlined_call_operand.vmem [shape: f32[64,32], index: 5, kind: input, shape index: {}]
  %s6 = inlined_call_operand.vmem [shape: f32[1,32], index: 6, kind: input, shape index: {}]
  %s7 = inlined_call_operand.hbm [shape: f32[16,32], index: 7, kind: output, shape index: {}]
  %s8 = sld [smem:[#allocation0]]
  $region46: #{tpu_custom_call.1} parent=0
    _
  %s10 = ssub.s32 1, %s8
  %s11 = scalar_select 0, %s10, %s8
  $region1: #{tpu_custom_call.1} parent=0
    #allocation2 [shape = 'u8[8192]{0}', space=vmem, size = 0x2000, scoped, tag = 'output window, operand 0, single buffered']
    #allocation3 [shape = 's32[1]{0}', space=sflag, size = 0x4, scoped, tag = 'scoped memory for tpu_custom_call.1']
    %12 = vsyncpa [#allocation3], 0
    // Predicated region
    $region2: #{tpu_custom_call.1} parent=1 // pred_check
      _
    $region3: #{tpu_custom_call.1} parent=1 // pred_check_branch
      %14 = sbr.rel (0) target = $region5
    $region4: #{tpu_custom_call.1} parent=1 // pred_region
      _
    $region5: #{tpu_custom_call.1} parent=1 // pred_fallthru
      _
    // Predicated region
    $region6: #{tpu_custom_call.1} parent=1 // pred_check
      _
    $region7: #{tpu_custom_call.1} parent=1 // pred_check_branch
      %16 = sbr.rel (0) target = $region9
    $region8: #{tpu_custom_call.1} parent=1 // pred_region
      _
    $region9: #{tpu_custom_call.1} parent=1 // pred_fallthru
      _
    // Predicated region
    $region10: #{tpu_custom_call.1} parent=1 // pred_check
      _
    $region11: #{tpu_custom_call.1} parent=1 // pred_check_branch
      %18 = sbr.rel (0) target = $region13
    $region12: #{tpu_custom_call.1} parent=1 // pred_region
      _
    $region13: #{tpu_custom_call.1} parent=1 // pred_fallthru
      _
    // Predicated region
    $region14: #{tpu_custom_call.1} parent=1 // pred_check
      _
    $region15: #{tpu_custom_call.1} parent=1 // pred_check_branch
      %20 = sbr.rel (0) target = $region17
    $region16: #{tpu_custom_call.1} parent=1 // pred_region
      _
    $region17: #{tpu_custom_call.1} parent=1 // pred_fallthru
      _
    // Predicated region
    $region18: #{tpu_custom_call.1} parent=1 // pred_check
      _
    $region19: #{tpu_custom_call.1} parent=1 // pred_check_branch
      %22 = sbr.rel (0) target = $region21
    $region20: #{tpu_custom_call.1} parent=1 // pred_region
      _
    $region21: #{tpu_custom_call.1} parent=1 // pred_fallthru
      _
    // Predicated region
    $region22: #{tpu_custom_call.1} parent=1 // pred_check
      _
    $region23: #{tpu_custom_call.1} parent=1 // pred_check_branch
      %24 = sbr.rel (0) target = $region25
    $region24: #{tpu_custom_call.1} parent=1 // pred_region
      _
    $region25: #{tpu_custom_call.1} parent=1 // pred_fallthru
      _
    // Predicated region
    $region26: #{tpu_custom_call.1} parent=1 // pred_check
      _
    $region27: #{tpu_custom_call.1} parent=1 // pred_check_branch
      %26 = sbr.rel (0) target = $region29
    $region28: #{tpu_custom_call.1} parent=1 // pred_region
      _
    $region29: #{tpu_custom_call.1} parent=1 // pred_fallthru
      _
    %p27 = scmp.eq.s32.totalorder 0, 0
    // Predicated region
    $region30: #{tpu_custom_call.1} parent=1 // pred_check
      %p28 = pneg %p27
    $region31: #{tpu_custom_call.1} parent=1 // pred_check_branch
      %30 = sbr.rel (%p28) target = $region33
    $region32: #{tpu_custom_call.1} parent=1 // pred_region
      %vm31 = vcmask 261120
      %32 = vst.msk [vmem:[#allocation2] sm:$0xff] %vm31, 0.0
      %33 = vst.msk [vmem:[#allocation2 + $0x8] sm:$0xff] %vm31, 0.0
    $region33: #{tpu_custom_call.1} parent=1 // pred_fallthru
      _
    %v34 = vld [vmem:[%s0] sm:$0xff]
    %v35 = vld [vmem:[%s0 + $0x8] sm:$0xff]
    %v36 = vld [vmem:[%s1] sm:$0xff]
    %v37 = vld [vmem:[%s1 + $0x8] sm:$0xff]
    %v38 = vld [vmem:[%s1 + $0x10] sm:$0xff]
    %v39 = vld [vmem:[%s1 + $0x18] sm:$0xff]
    %v40 = vld [vmem:[%s2] sm:$0x1]
    %v42 = vlaneseq
    %v43 = vshrl.u32 %v42, 7
    %v44 = vsub.s32 0, %v43
    %v45 = vrot.slane %v40, %v44
    %vm47 = vcmask 261120
    %v49 = vsel %vm47, %v34, 0
    %v52 = vsel %vm47, %v35, 0
    %54 = vmatprep.subr.mxu0 0.0
    %55 = vmatpush1.msra.mxu0 %v36
    %56 = vmatprep.subr.mxu0 0.0
    %57 = vmatpush1.msra.mxu0 %v37
    %58 = vmatprep.subr.mxu0 0.0
    %59 = vmatpush1.msra.mxu0 %v38
    %60 = vmatprep.subr.mxu0 0.0
    %61 = vmatpush1.msra.mxu0 %v39
    %62 = vmatprep.subr.mxu0 0.0
    %63 = vmatpush1.msra.mxu0 0.0
    %64 = vmatprep.subr.mxu0 0.0
    %65 = vmatpush1.msra.mxu0 0.0
    %66 = vmatprep.subr.mxu0 0.0
    %67 = vmatpush1.msra.mxu0 0.0
    %68 = vmatprep.subr.mxu0 0.0
    %69 = vmatpush1.msra.mxu0 0.0
    %70 = vmatprep.subr.mxu0 0.0
    %71 = vmatpush1.msra.mxu0 0.0
    %72 = vmatprep.subr.mxu0 0.0
    %73 = vmatpush1.msra.mxu0 0.0
    %74 = vmatprep.subr.mxu0 0.0
    %75 = vmatpush1.msra.mxu0 0.0
    %76 = vmatprep.subr.mxu0 0.0
    %77 = vmatpush1.msra.mxu0 0.0
    %78 = vmatprep.subr.mxu0 0.0
    %79 = vmatpush1.msra.mxu0 0.0
    %80 = vmatprep.subr.mxu0 0.0
    %81 = vmatpush1.msra.mxu0 0.0
    %82 = vmatprep.subr.mxu0 0.0
    %83 = vmatpush1.msra.mxu0 0.0
    %84 = vmatprep.subr.mxu0 0.0
    %85 = vmatpush1.msra.mxu0 0.0
    %86 = vmatprep.subr.mxu0 0.0
    %87 = vmatpush1.msra.mxu0 0.0
    %88 = vmatprep.subr.mxu0 0.0
    %89 = vmatpush1.msra.mxu0 0.0
    %90 = vmatprep.subr.mxu0 0.0
    %91 = vmatpush1.msra.mxu0 0.0
    %92 = vmatprep.subr.mxu0 0.0
    %93 = vmatpush1.msra.mxu0 0.0
    %94 = vmatprep.subr.mxu0 0.0
    %95 = vmatpush1.msra.mxu0 0.0
    %96 = vmatprep.subr.mxu0 0.0
    %97 = vmatpush1.msra.mxu0 0.0
    %98 = vmatprep.subr.mxu0 0.0
    %99 = vmatpush1.msra.mxu0 0.0
    %100 = vmatprep.subr.mxu0 0.0
    %101 = vmatpush1.msra.mxu0 0.0
    %102 = vmatprep.subr.mxu0 0.0
    %103 = vmatpush1.msra.mxu0 0.0
    %104 = vmatprep.subr.mxu0 0.0
    %105 = vmatpush1.msra.mxu0 0.0
    %106 = vmatprep.subr.mxu0 0.0
    %107 = vmatpush1.msra.mxu0 0.0
    %108 = vmatprep.subr.mxu0 0.0
    %109 = vmatpush1.msra.mxu0 0.0
    %110 = vmatprep.subr.mxu0 0.0
    %111 = vmatpush1.msra.mxu0 0.0
    %112 = vmatprep.subr.mxu0 0.0
    %113 = vmatpush1.msra.mxu0 0.0
    %114 = vmatprep.subr.mxu0 0.0
    %115 = vmatpush1.msra.mxu0 0.0
    %116 = vmatprep.subr.mxu0 0.0
    %117 = vmatpush1.msra.mxu0 0.0
    %118 = vmatprep.mubr.f32.mxu0 0.0
    %119 = vmatmul.mubr.f32.gmra.mrb[0].mxu0 %v49
    %v120 = vpop.f32.mrb[0].mxu0
    %v121 = vadd.f32 %v45, %v120
    %v122 = vpop.f32.mrb[0].mxu0
    %123 = vmatprep.mubr.f32.mxu0 0.0
    %124 = vmatmul.mubr.f32.gmra.mrb[0].mxu0 %v52
    %v125 = vpop.f32.mrb[0].mxu0
    %v126 = vadd.f32 %v45, %v125
    %v127 = vpop.f32.mrb[0].mxu0
    %128 = vdwg.mxu0
    %v129 = vld [vmem:[%s3] sm:$0xff]
    %v130 = vld [vmem:[%s3 + $0x8] sm:$0xff]
    %v131 = vld [vmem:[%s3 + $0x10] sm:$0xff]
    %v132 = vld [vmem:[%s3 + $0x18] sm:$0xff]
    %v133 = vld [vmem:[%s4] sm:$0x1]
    %v135 = vlaneseq
    %v136 = vshrl.u32 %v135, 7
    %v137 = vsub.s32 0, %v136
    %v138 = vrot.slane %v133, %v137
    %140 = vmatprep.subr.mxu0 0.0
    %141 = vmatpush1.msra.mxu0 %v129
    %142 = vmatprep.subr.mxu0 0.0
    %143 = vmatpush1.msra.mxu0 %v130
    %144 = vmatprep.subr.mxu0 0.0
    %145 = vmatpush1.msra.mxu0 %v131
    %146 = vmatprep.subr.mxu0 0.0
    %147 = vmatpush1.msra.mxu0 %v132
    %148 = vmatprep.subr.mxu0 0.0
    %149 = vmatpush1.msra.mxu0 0.0
    %150 = vmatprep.subr.mxu0 0.0
    %151 = vmatpush1.msra.mxu0 0.0
    %152 = vmatprep.subr.mxu0 0.0
    %153 = vmatpush1.msra.mxu0 0.0
    %154 = vmatprep.subr.mxu0 0.0
    %155 = vmatpush1.msra.mxu0 0.0
    %156 = vmatprep.subr.mxu0 0.0
    %157 = vmatpush1.msra.mxu0 0.0
    %158 = vmatprep.subr.mxu0 0.0
    %159 = vmatpush1.msra.mxu0 0.0
    %160 = vmatprep.subr.mxu0 0.0
    %161 = vmatpush1.msra.mxu0 0.0
    %162 = vmatprep.subr.mxu0 0.0
    %163 = vmatpush1.msra.mxu0 0.0
    %164 = vmatprep.subr.mxu0 0.0
    %165 = vmatpush1.msra.mxu0 0.0
    %166 = vmatprep.subr.mxu0 0.0
    %167 = vmatpush1.msra.mxu0 0.0
    %168 = vmatprep.subr.mxu0 0.0
    %169 = vmatpush1.msra.mxu0 0.0
    %170 = vmatprep.subr.mxu0 0.0
    %171 = vmatpush1.msra.mxu0 0.0
    %172 = vmatprep.subr.mxu0 0.0
    %173 = vmatpush1.msra.mxu0 0.0
    %174 = vmatprep.subr.mxu0 0.0
    %175 = vmatpush1.msra.mxu0 0.0
    %176 = vmatprep.subr.mxu0 0.0
    %177 = vmatpush1.msra.mxu0 0.0
    %178 = vmatprep.subr.mxu0 0.0
    %179 = vmatpush1.msra.mxu0 0.0
    %180 = vmatprep.subr.mxu0 0.0
    %181 = vmatpush1.msra.mxu0 0.0
    %182 = vmatprep.subr.mxu0 0.0
    %183 = vmatpush1.msra.mxu0 0.0
    %184 = vmatprep.subr.mxu0 0.0
    %185 = vmatpush1.msra.mxu0 0.0
    %186 = vmatprep.subr.mxu0 0.0
    %187 = vmatpush1.msra.mxu0 0.0
    %188 = vmatprep.subr.mxu0 0.0
    %189 = vmatpush1.msra.mxu0 0.0
    %190 = vmatprep.subr.mxu0 0.0
    %191 = vmatpush1.msra.mxu0 0.0
    %192 = vmatprep.subr.mxu0 0.0
    %193 = vmatpush1.msra.mxu0 0.0
    %194 = vmatprep.subr.mxu0 0.0
    %195 = vmatpush1.msra.mxu0 0.0
    %196 = vmatprep.subr.mxu0 0.0
    %197 = vmatpush1.msra.mxu0 0.0
    %198 = vmatprep.subr.mxu0 0.0
    %199 = vmatpush1.msra.mxu0 0.0
    %200 = vmatprep.subr.mxu0 0.0
    %201 = vmatpush1.msra.mxu0 0.0
    %202 = vmatprep.subr.mxu0 0.0
    %203 = vmatpush1.msra.mxu0 0.0
    %204 = vmatprep.mubr.f32.mxu0 0.0
    %205 = vmatmul.mubr.f32.gmra.mrb[0].mxu0 %v49
    %v206 = vpop.f32.mrb[0].mxu0
    %v207 = vadd.f32 %v138, %v206
    %v208 = vpop.f32.mrb[0].mxu0
    %209 = vmatprep.mubr.f32.mxu0 0.0
    %210 = vmatmul.mubr.f32.gmra.mrb[0].mxu0 %v52
    %v211 = vpop.f32.mrb[0].mxu0
    %v212 = vadd.f32 %v138, %v211
    %v213 = vpop.f32.mrb[0].mxu0
    %214 = vdwg.mxu0
    %v215 = vxor.u32 %v121, 2147483648
    %v216 = vxor.u32 %v126, 2147483648
    %v217 = vmul.f32 %v215, 1.442695
    %v218 = vpow.pop %v217
    %v219 = vmul.f32 %v216, 1.442695
    %v220 = vpow.pop %v219
    %v221 = vadd.f32 %v218, 1.0
    %v222 = vadd.f32 %v220, 1.0
    %v223 = vrcp.pop %v221
    %v224 = vmul.f32 1.0, %v223
    %v225 = vrcp.pop %v222
    %v226 = vmul.f32 1.0, %v225
    %v227 = vmul.f32 %v121, %v224
    %v228 = vmul.f32 %v126, %v226
    %v229 = vmul.f32 %v227, %v207
    %v230 = vmul.f32 %v228, %v212
    %v231 = vld [vmem:[#allocation2] sm:$0xff]
    %v232 = vld [vmem:[#allocation2 + $0x8] sm:$0xff]
    %v233 = vld [vmem:[%s5] sm:$0xff]
    %v234 = vld [vmem:[%s5 + $0x8] sm:$0xff]
    %v235 = vld [vmem:[%s5 + $0x10] sm:$0xff]
    %v236 = vld [vmem:[%s5 + $0x18] sm:$0xff]
    %v237 = vld [vmem:[%s5 + $0x20] sm:$0xff]
    %v238 = vld [vmem:[%s5 + $0x28] sm:$0xff]
    %v239 = vld [vmem:[%s5 + $0x30] sm:$0xff]
    %v240 = vld [vmem:[%s5 + $0x38] sm:$0xff]
    %vm241 = vcmask 523264
    %v243 = vsel %vm241, %v229, 0
    %v246 = vsel %vm241, %v230, 0
    %248 = vmatprep.subr.mxu0 0.0
    %249 = vmatpush1.msra.mxu0 %v233
    %250 = vmatprep.subr.mxu0 0.0
    %251 = vmatpush1.msra.mxu0 %v234
    %252 = vmatprep.subr.mxu0 0.0
    %253 = vmatpush1.msra.mxu0 %v235
    %254 = vmatprep.subr.mxu0 0.0
    %255 = vmatpush1.msra.mxu0 %v236
    %256 = vmatprep.subr.mxu0 0.0
    %257 = vmatpush1.msra.mxu0 %v237
    %258 = vmatprep.subr.mxu0 0.0
    %259 = vmatpush1.msra.mxu0 %v238
    %260 = vmatprep.subr.mxu0 0.0
    %261 = vmatpush1.msra.mxu0 %v239
    %262 = vmatprep.subr.mxu0 0.0
    %263 = vmatpush1.msra.mxu0 %v240
    %264 = vmatprep.subr.mxu0 0.0
    %265 = vmatpush1.msra.mxu0 0.0
    %266 = vmatprep.subr.mxu0 0.0
    %267 = vmatpush1.msra.mxu0 0.0
    %268 = vmatprep.subr.mxu0 0.0
    %269 = vmatpush1.msra.mxu0 0.0
    %270 = vmatprep.subr.mxu0 0.0
    %271 = vmatpush1.msra.mxu0 0.0
    %272 = vmatprep.subr.mxu0 0.0
    %273 = vmatpush1.msra.mxu0 0.0
    %274 = vmatprep.subr.mxu0 0.0
    %275 = vmatpush1.msra.mxu0 0.0
    %276 = vmatprep.subr.mxu0 0.0
    %277 = vmatpush1.msra.mxu0 0.0
    %278 = vmatprep.subr.mxu0 0.0
    %279 = vmatpush1.msra.mxu0 0.0
    %280 = vmatprep.subr.mxu0 0.0
    %281 = vmatpush1.msra.mxu0 0.0
    %282 = vmatprep.subr.mxu0 0.0
    %283 = vmatpush1.msra.mxu0 0.0
    %284 = vmatprep.subr.mxu0 0.0
    %285 = vmatpush1.msra.mxu0 0.0
    %286 = vmatprep.subr.mxu0 0.0
    %287 = vmatpush1.msra.mxu0 0.0
    %288 = vmatprep.subr.mxu0 0.0
    %289 = vmatpush1.msra.mxu0 0.0
    %290 = vmatprep.subr.mxu0 0.0
    %291 = vmatpush1.msra.mxu0 0.0
    %292 = vmatprep.subr.mxu0 0.0
    %293 = vmatpush1.msra.mxu0 0.0
    %294 = vmatprep.subr.mxu0 0.0
    %295 = vmatpush1.msra.mxu0 0.0
    %296 = vmatprep.subr.mxu0 0.0
    %297 = vmatpush1.msra.mxu0 0.0
    %298 = vmatprep.subr.mxu0 0.0
    %299 = vmatpush1.msra.mxu0 0.0
    %300 = vmatprep.subr.mxu0 0.0
    %301 = vmatpush1.msra.mxu0 0.0
    %302 = vmatprep.subr.mxu0 0.0
    %303 = vmatpush1.msra.mxu0 0.0
    %304 = vmatprep.subr.mxu0 0.0
    %305 = vmatpush1.msra.mxu0 0.0
    %306 = vmatprep.subr.mxu0 0.0
    %307 = vmatpush1.msra.mxu0 0.0
    %308 = vmatprep.subr.mxu0 0.0
    %309 = vmatpush1.msra.mxu0 0.0
    %310 = vmatprep.subr.mxu0 0.0
    %311 = vmatpush1.msra.mxu0 0.0
    %312 = vmatprep.mubr.f32.mxu0 0.0
    %313 = vmatmul.mubr.f32.gmra.mrb[0].mxu0 %v243
    %v314 = vpop.f32.mrb[0].mxu0
    %v315 = vadd.f32 0.0, %v314
    %v316 = vpop.f32.mrb[0].mxu0
    %317 = vmatprep.mubr.f32.mxu0 0.0
    %318 = vmatmul.mubr.f32.gmra.mrb[0].mxu0 %v246
    %v319 = vpop.f32.mrb[0].mxu0
    %v320 = vadd.f32 0.0, %v319
    %v321 = vpop.f32.mrb[0].mxu0
    %322 = vdwg.mxu0
    %v323 = vadd.f32 %v231, %v315
    %v324 = vadd.f32 %v232, %v320
    %325 = vst.msk [vmem:[#allocation2] sm:$0xff] %vm47, %v323
    %326 = vst.msk [vmem:[#allocation2 + $0x8] sm:$0xff] %vm47, %v324
    // Predicated region
    $region34: #{tpu_custom_call.1} parent=1 // pred_check
      %p327 = pneg %p27
    $region35: #{tpu_custom_call.1} parent=1 // pred_check_branch
      %329 = sbr.rel (%p327) target = $region37
    $region36: #{tpu_custom_call.1} parent=1 // pred_region
      %v330 = vld [vmem:[#allocation2] sm:$0xff]
      %v331 = vld [vmem:[#allocation2 + $0x8] sm:$0xff]
      %v332 = vld [vmem:[%s6] sm:$0x1]
      %v334 = vlaneseq
      %v335 = vshrl.u32 %v334, 7
      %v336 = vsub.s32 0, %v335
      %v337 = vrot.slane %v332, %v336
      %v339 = vadd.f32 %v330, %v337
      %v340 = vadd.f32 %v331, %v337
      %341 = vst.msk [vmem:[#allocation2] sm:$0xff] %vm47, %v339
      %342 = vst.msk [vmem:[#allocation2 + $0x8] sm:$0xff] %vm47, %v340
    $region37: #{tpu_custom_call.1} parent=1 // pred_fallthru
      _
    // Predicated region
    $region38: #{tpu_custom_call.1} parent=1 // pred_check
      _
    $region39: #{tpu_custom_call.1} parent=1 // pred_check_branch
      %344 = sbr.rel (0) target = $region41
    $region40: #{tpu_custom_call.1} parent=1 // pred_region
      %s346 = ssub.s32 256, 256
      %347 = vsyncadd [#allocation3], %s346
      %s348 = sshll.u32 [#allocation2], 4
      %s349 = int_to_ptr.vmem [resolvable:$true] %s348
      %354 = dma.vmem_to_hbm [thread:$0]  %s349, 256, %s7, [#allocation3], 128, 128, 8
    $region41: #{tpu_custom_call.1} parent=1 // pred_fallthru
      _
    // Predicated region
    $region42: #{tpu_custom_call.1} parent=1 // pred_check
      _
    $region43: #{tpu_custom_call.1} parent=1 // pred_check_branch
      %356 = sbr.rel (0) target = $region45
    $region44: #{tpu_custom_call.1} parent=1 // pred_region
      %357 = dma.done [#allocation3], 256
    $region45: #{tpu_custom_call.1} parent=1 // pred_fallthru
      _
    %358 = vsyncpa [#allocation3], 1

</llo_original>
